<compile_context>
chip_gen: v6e
topology: v6e:2x2x1
jax: 0.10.0
libtpu: 0.0.40
codegen_flags: <defaults>
</compile_context>

<pallas_src>
import math
from functools import partial

import jax
import jax.numpy as jnp
from jax.experimental import pallas as pl
from jax.experimental.pallas import tpu as pltpu

LANE = 128      # lane width (last dim alignment)
SUBLANE = 8     # sublane width (second-to-last dim alignment)
_BN_EPS = 1e-5


def _round_up(v, m):
    return (v + m - 1) // m * m


def _pad2d(a, rows, cols):
    r, c = a.shape
    return jnp.pad(a, ((0, rows - r), (0, cols - c)))


# ----------------------------------------------------------------------------
# Fused kernel: Linear -> [BN -> ReLU -> Linear] * num_hidden
# ----------------------------------------------------------------------------
def make_fused_mlp_kernel(num_hidden, n_valid, n_pad):
    """Ref layout: x, w0, b0, (gamma_i, beta_i, w_i, b_i) * num_hidden, out.

    Weights are pre-transposed to (C_in_pad, C_out_pad); biases/gamma/beta are
    (1, C_pad).  All intermediate activations live in VMEM/vregs only.
    """
    inv_n = 1.0 / float(n_valid)
    needs_mask = n_valid < n_pad

    def kernel(*refs):
        x_ref = refs[0]
        out_ref = refs[-1]

        # First linear layer: x @ W0 (pre-transposed) + b0
        x = (jnp.dot(x_ref[...], refs[1][...], preferred_element_type=jnp.float32)
             + refs[2][...])

        if needs_mask:
            row_ids = jax.lax.broadcasted_iota(jnp.int32, (n_pad, 1), 0)
            row_mask = (row_ids < n_valid).astype(jnp.float32)  # (n_pad, 1)
        else:
            row_mask = None

        idx = 3
        for _ in range(num_hidden):
            gamma, beta = refs[idx][...], refs[idx + 1][...]
            w, b = refs[idx + 2][...], refs[idx + 3][...]
            idx += 4

            # Training-mode BatchNorm1d over the *valid* rows only
            # (biased variance, eps=1e-5, matching PyTorch).
            xm = x * row_mask if needs_mask else x
            mean = jnp.sum(xm, axis=0, keepdims=True) * inv_n
            d = x - mean
            d2 = d * d
            if needs_mask:
                d2 = d2 * row_mask
            var = jnp.sum(d2, axis=0, keepdims=True) * inv_n
            y = d * jax.lax.rsqrt(var + _BN_EPS) * gamma + beta
            y = jnp.maximum(y, 0.0)
            # TODO(synk): dropout with p > 0 would use pltpu.prng_seed /
            # pltpu.prng_random_bits; the module default p=0.0 is a no-op.
            x = jnp.dot(y, w, preferred_element_type=jnp.float32) + b

        out_ref[...] = x

    return kernel


# ----------------------------------------------------------------------------
# Parameter packing: transpose + pad + reshape ONCE, outside the kernel
# ----------------------------------------------------------------------------
def pack_mlp_params(lins, norms):
    packed = []
    w0, b0 = lins[0]
    c_out0, c_in0 = w0.shape
    packed.append(_pad2d(w0.T, _round_up(c_in0, LANE), _round_up(c_out0, LANE)))
    packed.append(_pad2d(b0.reshape(1, -1), 1, _round_up(c_out0, LANE)))
    for (w, b), (gamma, beta) in zip(lins[1:], norms):
        c_out, c_in = w.shape
        cip, cop = _round_up(c_in, LANE), _round_up(c_out, LANE)
        packed.append(_pad2d(gamma.reshape(1, -1), 1, cip))
        packed.append(_pad2d(beta.reshape(1, -1), 1, cip))
        packed.append(_pad2d(w.T, cip, cop))
        packed.append(_pad2d(b.reshape(1, -1), 1, cop))
    return tuple(packed)


# ----------------------------------------------------------------------------
# Forward wrapper (single fused pallas_call)
# ----------------------------------------------------------------------------
@partial(jax.jit, static_argnames=("channel_list",))
def mlp_forward(x, packed, channel_list):
    n, c_in = x.shape
    c_out = channel_list[-1]
    num_hidden = (len(packed) - 2) // 4

    n_pad = _round_up(max(n, SUBLANE), SUBLANE)
    ci_pad = _round_up(c_in, LANE)
    co_pad = _round_up(c_out, LANE)
    x_pad = _pad2d(x, n_pad, ci_pad)

    # VMEM budget (static): whole padded batch + params resident.
    max_c_pad = max(_round_up(c, LANE) for c in channel_list)
    act_bytes = n_pad * max_c_pad * 4
    param_bytes = sum(int(p.size) * 4 for p in packed)
    io_bytes = (x_pad.size + n_pad * co_pad) * 4
    vmem_est = 2 * io_bytes + param_bytes + 3 * act_bytes
    # TODO(synk): row-tiled two-pass BN path for batches too large for VMEM.
    assert vmem_est < 24 * 1024 * 1024, "batch too large for fused single-block MLP"

    kernel = make_fused_mlp_kernel(num_hidden, n, n_pad)

    def full_spec(a):
        return pl.BlockSpec(a.shape, lambda: (0,) * a.ndim)

    flops = 2 * n * sum(ci * co for ci, co in zip(channel_list[:-1], channel_list[1:]))
    bytes_accessed = int(x.size) * 4 + param_bytes + n * c_out * 4
    transcendentals = n * sum(channel_list[1:-1])  # rsqrt work (upper bound)

    out_pad = pl.pallas_call(
        kernel,
        out_shape=jax.ShapeDtypeStruct((n_pad, co_pad), jnp.float32),
        in_specs=[full_spec(x_pad)] + [full_spec(p) for p in packed],
        out_specs=pl.BlockSpec((n_pad, co_pad), lambda: (0, 0)),
        cost_estimate=pl.CostEstimate(
            flops=flops,
            transcendentals=transcendentals,
            bytes_accessed=bytes_accessed,
        ),
        compiler_params=pltpu.CompilerParams(
            vmem_limit_bytes=max(int(vmem_est) * 2, 1 << 20),
        ),
    )(x_pad, *packed)

    return out_pad[:n, :c_out]


# ----------------------------------------------------------------------------
# Parameter init (deterministic, PyTorch Linear-style uniform bounds)
# ----------------------------------------------------------------------------
def init_mlp_params(key, channel_list):
    lins = []
    norms = []
    for c_in, c_out in zip(channel_list[:-1], channel_list[1:]):
        key, kw, kb = jax.random.split(key, 3)
        bound = 1.0 / math.sqrt(c_in)
        w = jax.random.uniform(kw, (c_out, c_in), jnp.float32, -bound, bound)
        b = jax.random.uniform(kb, (c_out,), jnp.float32, -bound, bound)
        lins.append((w, b))
    for c_hidden in channel_list[1:-1]:
        # BatchNorm1d default init: weight = 1, bias = 0
        norms.append((jnp.ones((c_hidden,), jnp.float32),
                      jnp.zeros((c_hidden,), jnp.float32)))
    return lins, norms


def mlp_reference(x, lins, norms):
    """Plain-JAX reference for correctness check."""
    w0, b0 = lins[0]
    x = x @ w0.T + b0
    for (w, b), (gamma, beta) in zip(lins[1:], norms):
        mean = jnp.mean(x, axis=0, keepdims=True)
        var = jnp.mean((x - mean) ** 2, axis=0, keepdims=True)
        x = (x - mean) * jax.lax.rsqrt(var + _BN_EPS) * gamma + beta
        x = jnp.maximum(x, 0.0)
        x = x @ w.T + b
    return x


if __name__ == "__main__":
    channel_list = (16, 32, 32, 8)   # 3-layer MLP: 16 -> 32 -> 32 -> 8
    batch = 8

    key = jax.random.PRNGKey(0)
    key, kx = jax.random.split(key)
    x = jax.random.normal(kx, (batch, channel_list[0]), jnp.float32)

    lins, norms = init_mlp_params(key, channel_list)
    packed = pack_mlp_params(lins, norms)

    out = mlp_forward(x, packed, channel_list)
    out = jax.block_until_ready(out)

    ref = mlp_reference(x, lins, norms)
    assert out.shape == (batch, channel_list[-1])
    assert jnp.allclose(out, ref, atol=1e-4, rtol=1e-4), "mismatch vs JAX reference"

    print("KERNEL_OK")
</pallas_src>

<mosaic_0001>
module attributes {stable_mosaic.version = 11 : i64} {
  func.func @kernel(%arg0: memref<8x128xf32, #tpu.memory_space<vmem>>, %arg1: memref<128x128xf32, #tpu.memory_space<vmem>>, %arg2: memref<1x128xf32, #tpu.memory_space<vmem>>, %arg3: memref<1x128xf32, #tpu.memory_space<vmem>>, %arg4: memref<1x128xf32, #tpu.memory_space<vmem>>, %arg5: memref<128x128xf32, #tpu.memory_space<vmem>>, %arg6: memref<1x128xf32, #tpu.memory_space<vmem>>, %arg7: memref<1x128xf32, #tpu.memory_space<vmem>>, %arg8: memref<1x128xf32, #tpu.memory_space<vmem>>, %arg9: memref<128x128xf32, #tpu.memory_space<vmem>>, %arg10: memref<1x128xf32, #tpu.memory_space<vmem>>, %arg11: memref<8x128xf32, #tpu.memory_space<vmem>>) attributes {dimension_semantics = [], scalar_prefetch = 0 : i64, scratch_operands = 0 : i64, tpu.core_type = #tpu.core_type<tc>} {
    %c0 = arith.constant 0 : index
    %c0_0 = arith.constant 0 : index
    %0 = vector.load %arg0[%c0, %c0_0] : memref<8x128xf32, #tpu.memory_space<vmem>>, vector<8x128xf32>
    %c0_1 = arith.constant 0 : index
    %c0_2 = arith.constant 0 : index
    %1 = vector.load %arg1[%c0_1, %c0_2] : memref<128x128xf32, #tpu.memory_space<vmem>>, vector<128x128xf32>
    %cst = arith.constant dense<0.000000e+00> : vector<8x128xf32>
    %2 = tpu.matmul %0, %1, %cst {dimension_numbers = #tpu.dot_dimension_numbers<[1], [0], [0], [1], [0, 0, 1, 1], [], []>} : vector<8x128xf32>, vector<128x128xf32>, vector<8x128xf32> -> vector<8x128xf32>
    %c0_3 = arith.constant 0 : index
    %c0_4 = arith.constant 0 : index
    %3 = vector.load %arg2[%c0_3, %c0_4] : memref<1x128xf32, #tpu.memory_space<vmem>>, vector<1x128xf32>
    %4 = vector.broadcast %3 : vector<1x128xf32> to vector<8x128xf32>
    %5 = arith.addf %2, %4 : vector<8x128xf32>
    %c0_5 = arith.constant 0 : index
    %c0_6 = arith.constant 0 : index
    %6 = vector.load %arg3[%c0_5, %c0_6] : memref<1x128xf32, #tpu.memory_space<vmem>>, vector<1x128xf32>
    %c0_7 = arith.constant 0 : index
    %c0_8 = arith.constant 0 : index
    %7 = vector.load %arg4[%c0_7, %c0_8] : memref<1x128xf32, #tpu.memory_space<vmem>>, vector<1x128xf32>
    %c0_9 = arith.constant 0 : index
    %c0_10 = arith.constant 0 : index
    %8 = vector.load %arg5[%c0_9, %c0_10] : memref<128x128xf32, #tpu.memory_space<vmem>>, vector<128x128xf32>
    %c0_11 = arith.constant 0 : index
    %c0_12 = arith.constant 0 : index
    %9 = vector.load %arg6[%c0_11, %c0_12] : memref<1x128xf32, #tpu.memory_space<vmem>>, vector<1x128xf32>
    %cst_13 = arith.constant dense<0.000000e+00> : vector<128xf32>
    %10 = vector.multi_reduction <add>, %5, %cst_13 [0] : vector<8x128xf32> to vector<128xf32>
    %11 = vector.shape_cast %10 : vector<128xf32> to vector<1x128xf32>
    %cst_14 = arith.constant 1.250000e-01 : f32
    %12 = vector.broadcast %cst_14 : f32 to vector<1x128xf32>
    %13 = arith.mulf %11, %12 : vector<1x128xf32>
    %14 = vector.broadcast %13 : vector<1x128xf32> to vector<8x128xf32>
    %15 = arith.subf %5, %14 : vector<8x128xf32>
    %16 = arith.mulf %15, %15 : vector<8x128xf32>
    %cst_15 = arith.constant dense<0.000000e+00> : vector<128xf32>
    %17 = vector.multi_reduction <add>, %16, %cst_15 [0] : vector<8x128xf32> to vector<128xf32>
    %18 = vector.shape_cast %17 : vector<128xf32> to vector<1x128xf32>
    %cst_16 = arith.constant 1.250000e-01 : f32
    %19 = vector.broadcast %cst_16 : f32 to vector<1x128xf32>
    %20 = arith.mulf %18, %19 : vector<1x128xf32>
    %cst_17 = arith.constant 9.99999974E-6 : f32
    %21 = vector.broadcast %cst_17 : f32 to vector<1x128xf32>
    %22 = arith.addf %20, %21 : vector<1x128xf32>
    %23 = math.rsqrt %22 : vector<1x128xf32>
    %24 = vector.broadcast %23 : vector<1x128xf32> to vector<8x128xf32>
    %25 = arith.mulf %15, %24 : vector<8x128xf32>
    %26 = vector.broadcast %6 : vector<1x128xf32> to vector<8x128xf32>
    %27 = arith.mulf %25, %26 : vector<8x128xf32>
    %28 = vector.broadcast %7 : vector<1x128xf32> to vector<8x128xf32>
    %29 = arith.addf %27, %28 : vector<8x128xf32>
    %cst_18 = arith.constant 0.000000e+00 : f32
    %30 = vector.broadcast %cst_18 : f32 to vector<8x128xf32>
    %31 = arith.maximumf %29, %30 : vector<8x128xf32>
    %cst_19 = arith.constant dense<0.000000e+00> : vector<8x128xf32>
    %32 = tpu.matmul %31, %8, %cst_19 {dimension_numbers = #tpu.dot_dimension_numbers<[1], [0], [0], [1], [0, 0, 1, 1], [], []>} : vector<8x128xf32>, vector<128x128xf32>, vector<8x128xf32> -> vector<8x128xf32>
    %33 = vector.broadcast %9 : vector<1x128xf32> to vector<8x128xf32>
    %34 = arith.addf %32, %33 : vector<8x128xf32>
    %c0_20 = arith.constant 0 : index
    %c0_21 = arith.constant 0 : index
    %35 = vector.load %arg7[%c0_20, %c0_21] : memref<1x128xf32, #tpu.memory_space<vmem>>, vector<1x128xf32>
    %c0_22 = arith.constant 0 : index
    %c0_23 = arith.constant 0 : index
    %36 = vector.load %arg8[%c0_22, %c0_23] : memref<1x128xf32, #tpu.memory_space<vmem>>, vector<1x128xf32>
    %c0_24 = arith.constant 0 : index
    %c0_25 = arith.constant 0 : index
    %37 = vector.load %arg9[%c0_24, %c0_25] : memref<128x128xf32, #tpu.memory_space<vmem>>, vector<128x128xf32>
    %c0_26 = arith.constant 0 : index
    %c0_27 = arith.constant 0 : index
    %38 = vector.load %arg10[%c0_26, %c0_27] : memref<1x128xf32, #tpu.memory_space<vmem>>, vector<1x128xf32>
    %cst_28 = arith.constant dense<0.000000e+00> : vector<128xf32>
    %39 = vector.multi_reduction <add>, %34, %cst_28 [0] : vector<8x128xf32> to vector<128xf32>
    %40 = vector.shape_cast %39 : vector<128xf32> to vector<1x128xf32>
    %cst_29 = arith.constant 1.250000e-01 : f32
    %41 = vector.broadcast %cst_29 : f32 to vector<1x128xf32>
    %42 = arith.mulf %40, %41 : vector<1x128xf32>
    %43 = vector.broadcast %42 : vector<1x128xf32> to vector<8x128xf32>
    %44 = arith.subf %34, %43 : vector<8x128xf32>
    %45 = arith.mulf %44, %44 : vector<8x128xf32>
    %cst_30 = arith.constant dense<0.000000e+00> : vector<128xf32>
    %46 = vector.multi_reduction <add>, %45, %cst_30 [0] : vector<8x128xf32> to vector<128xf32>
    %47 = vector.shape_cast %46 : vector<128xf32> to vector<1x128xf32>
    %cst_31 = arith.constant 1.250000e-01 : f32
    %48 = vector.broadcast %cst_31 : f32 to vector<1x128xf32>
    %49 = arith.mulf %47, %48 : vector<1x128xf32>
    %cst_32 = arith.constant 9.99999974E-6 : f32
    %50 = vector.broadcast %cst_32 : f32 to vector<1x128xf32>
    %51 = arith.addf %49, %50 : vector<1x128xf32>
    %52 = math.rsqrt %51 : vector<1x128xf32>
    %53 = vector.broadcast %52 : vector<1x128xf32> to vector<8x128xf32>
    %54 = arith.mulf %44, %53 : vector<8x128xf32>
    %55 = vector.broadcast %35 : vector<1x128xf32> to vector<8x128xf32>
    %56 = arith.mulf %54, %55 : vector<8x128xf32>
    %57 = vector.broadcast %36 : vector<1x128xf32> to vector<8x128xf32>
    %58 = arith.addf %56, %57 : vector<8x128xf32>
    %cst_33 = arith.constant 0.000000e+00 : f32
    %59 = vector.broadcast %cst_33 : f32 to vector<8x128xf32>
    %60 = arith.maximumf %58, %59 : vector<8x128xf32>
    %cst_34 = arith.constant dense<0.000000e+00> : vector<8x128xf32>
    %61 = tpu.matmul %60, %37, %cst_34 {dimension_numbers = #tpu.dot_dimension_numbers<[1], [0], [0], [1], [0, 0, 1, 1], [], []>} : vector<8x128xf32>, vector<128x128xf32>, vector<8x128xf32> -> vector<8x128xf32>
    %62 = vector.broadcast %38 : vector<1x128xf32> to vector<8x128xf32>
    %63 = arith.addf %61, %62 : vector<8x128xf32>
    %c0_35 = arith.constant 0 : index
    %c0_36 = arith.constant 0 : index
    %64 = vector.load %arg11[%c0_35, %c0_36] : memref<8x128xf32, #tpu.memory_space<vmem>>, vector<8x128xf32>
    tpu.vector_store %arg11[%c0_35, %c0_36], %63 {strides = array<i32>} : memref<8x128xf32, #tpu.memory_space<vmem>>, vector<8x128xf32>,
    return
  }
}

</mosaic_0001>

<llo_original>
// kernel: mlp_forward.1
$region0: #{mlp_forward.1}
  #allocation0 [shape = 'u32[]', space=smem, size = 0x4, offset = 0x4, fixed_abs, tag = 'smem constant byte address 0x4 - core index']
  #allocation1 [shape = 'u32[144,128]{1,0:T(1,128)}', space=vmem, size = 0x12000, scoped, tag = 'internal scratch']
  %s0 = inlined_call_operand.vmem [shape: f32[8,128], index: 0, kind: input, shape index: {}]
  %s1 = inlined_call_operand.hbm [shape: f32[128,128], index: 1, kind: input, shape index: {}]
  %s2 = inlined_call_operand.vmem [shape: f32[1,128], index: 2, kind: input, shape index: {}]
  %s3 = inlined_call_operand.vmem [shape: f32[1,128], index: 3, kind: input, shape index: {}]
  %s4 = inlined_call_operand.vmem [shape: f32[1,128], index: 4, kind: input, shape index: {}]
  %s5 = inlined_call_operand.hbm [shape: f32[128,128], index: 5, kind: input, shape index: {}]
  %s6 = inlined_call_operand.vmem [shape: f32[1,128], index: 6, kind: input, shape index: {}]
  %s7 = inlined_call_operand.vmem [shape: f32[1,128], index: 7, kind: input, shape index: {}]
  %s8 = inlined_call_operand.vmem [shape: f32[1,128], index: 8, kind: input, shape index: {}]
  %s9 = inlined_call_operand.hbm [shape: f32[128,128], index: 9, kind: input, shape index: {}]
  %s10 = inlined_call_operand.vmem [shape: f32[1,128], index: 10, kind: input, shape index: {}]
  %s11 = inlined_call_operand.hbm [shape: f32[8,128], index: 11, kind: output, shape index: {}]
  %s12 = sld [smem:[#allocation0]]
  $region66: #{mlp_forward.1} parent=0
    _
  %s14 = ssub.s32 1, %s12
  %s15 = scalar_select 0, %s14, %s12
  $region1: #{mlp_forward.1} parent=0
    #allocation2 [shape = 'u8[65536]{0}', space=vmem, size = 0x10000, scoped, tag = 'input window, operand 1, single buffered']
    #allocation3 [shape = 's32[1]{0}', space=sflag, size = 0x4, scoped, tag = 'scoped memory for mlp_forward.1']
    #allocation4 [shape = 's32[1]{0}', space=sflag, size = 0x4, scoped, tag = 'scoped memory for mlp_forward.1']
    #allocation5 [shape = 'u8[65536]{0}', space=vmem, size = 0x10000, scoped, tag = 'input window, operand 5, single buffered']
    #allocation6 [shape = 's32[1]{0}', space=sflag, size = 0x4, scoped, tag = 'scoped memory for mlp_forward.1']
    #allocation7 [shape = 'u8[65536]{0}', space=vmem, size = 0x10000, scoped, tag = 'input window, operand 9, single buffered']
    #allocation8 [shape = 'u8[4096]{0}', space=vmem, size = 0x1000, scoped, tag = 'output window, operand 0, single buffered']
    %16 = vsyncpa [#allocation3], 0
    %17 = vsyncpa [#allocation6], 0
    %18 = vsyncpa [#allocation4], 0
    // Predicated region
    $region2: #{mlp_forward.1} parent=1 // pred_check
      _
    $region3: #{mlp_forward.1} parent=1 // pred_check_branch
      %20 = sbr.rel (0) target = $region5
    $region4: #{mlp_forward.1} parent=1 // pred_region
      _
    $region5: #{mlp_forward.1} parent=1 // pred_fallthru
      _
    // Predicated region
    $region6: #{mlp_forward.1} parent=1 // pred_check
      _
    $region7: #{mlp_forward.1} parent=1 // pred_check_branch
      %22 = sbr.rel (0) target = $region9
    $region8: #{mlp_forward.1} parent=1 // pred_region
      %s24 = ssub.s32 2048, 2048
      %25 = vsyncadd [#allocation3], %s24
      %s26 = sshll.u32 [#allocation2], 4
      %s27 = int_to_ptr.vmem [resolvable:$true] %s26
      %32 = dma.hbm_to_vmem [thread:$0]  %s1, 2048, %s27, [#allocation3], 128, 128, 8
    $region9: #{mlp_forward.1} parent=1 // pred_fallthru
      _
    // Predicated region
    $region10: #{mlp_forward.1} parent=1 // pred_check
      _
    $region11: #{mlp_forward.1} parent=1 // pred_check_branch
      %34 = sbr.rel (0) target = $region13
    $region12: #{mlp_forward.1} parent=1 // pred_region
      _
    $region13: #{mlp_forward.1} parent=1 // pred_fallthru
      _
    // Predicated region
    $region14: #{mlp_forward.1} parent=1 // pred_check
      _
    $region15: #{mlp_forward.1} parent=1 // pred_check_branch
      %36 = sbr.rel (0) target = $region17
    $region16: #{mlp_forward.1} parent=1 // pred_region
      _
    $region17: #{mlp_forward.1} parent=1 // pred_fallthru
      _
    // Predicated region
    $region18: #{mlp_forward.1} parent=1 // pred_check
      _
    $region19: #{mlp_forward.1} parent=1 // pred_check_branch
      %38 = sbr.rel (0) target = $region21
    $region20: #{mlp_forward.1} parent=1 // pred_region
      _
    $region21: #{mlp_forward.1} parent=1 // pred_fallthru
      _
    // Predicated region
    $region22: #{mlp_forward.1} parent=1 // pred_check
      _
    $region23: #{mlp_forward.1} parent=1 // pred_check_branch
      %40 = sbr.rel (0) target = $region25
    $region24: #{mlp_forward.1} parent=1 // pred_region
      %s42 = ssub.s32 2048, 2048
      %43 = vsyncadd [#allocation6], %s42
      %s44 = sshll.u32 [#allocation5], 4
      %s45 = int_to_ptr.vmem [resolvable:$true] %s44
      %50 = dma.hbm_to_vmem [thread:$0]  %s5, 2048, %s45, [#allocation6], 128, 128, 8
    $region25: #{mlp_forward.1} parent=1 // pred_fallthru
      _
    // Predicated region
    $region26: #{mlp_forward.1} parent=1 // pred_check
      _
    $region27: #{mlp_forward.1} parent=1 // pred_check_branch
      %52 = sbr.rel (0) target = $region29
    $region28: #{mlp_forward.1} parent=1 // pred_region
      _
    $region29: #{mlp_forward.1} parent=1 // pred_fallthru
      _
    // Predicated region
    $region30: #{mlp_forward.1} parent=1 // pred_check
      _
    $region31: #{mlp_forward.1} parent=1 // pred_check_branch
      %54 = sbr.rel (0) target = $region33
    $region32: #{mlp_forward.1} parent=1 // pred_region
      _
    $region33: #{mlp_forward.1} parent=1 // pred_fallthru
      _
    // Predicated region
    $region34: #{mlp_forward.1} parent=1 // pred_check
      _
    $region35: #{mlp_forward.1} parent=1 // pred_check_branch
      %56 = sbr.rel (0) target = $region37
    $region36: #{mlp_forward.1} parent=1 // pred_region
      _
    $region37: #{mlp_forward.1} parent=1 // pred_fallthru
      _
    // Predicated region
    $region38: #{mlp_forward.1} parent=1 // pred_check
      _
    $region39: #{mlp_forward.1} parent=1 // pred_check_branch
      %58 = sbr.rel (0) target = $region41
    $region40: #{mlp_forward.1} parent=1 // pred_region
      %s60 = ssub.s32 2048, 2048
      %61 = vsyncadd [#allocation6], %s60
      %s62 = sshll.u32 [#allocation7], 4
      %s63 = int_to_ptr.vmem [resolvable:$true] %s62
      %68 = dma.hbm_to_vmem [thread:$0]  %s9, 2048, %s63, [#allocation6], 128, 128, 8
    $region41: #{mlp_forward.1} parent=1 // pred_fallthru
      _
    // Predicated region
    $region42: #{mlp_forward.1} parent=1 // pred_check
      _
    $region43: #{mlp_forward.1} parent=1 // pred_check_branch
      %70 = sbr.rel (0) target = $region45
    $region44: #{mlp_forward.1} parent=1 // pred_region
      _
    $region45: #{mlp_forward.1} parent=1 // pred_fallthru
      _
    // Predicated region
    $region46: #{mlp_forward.1} parent=1 // pred_check
      _
    $region47: #{mlp_forward.1} parent=1 // pred_check_branch
      %72 = sbr.rel (0) target = $region49
    $region48: #{mlp_forward.1} parent=1 // pred_region
      %73 = dma.done [#allocation3], 2048
    $region49: #{mlp_forward.1} parent=1 // pred_fallthru
      _
    // Predicated region
    $region50: #{mlp_forward.1} parent=1 // pred_check
      _
    $region51: #{mlp_forward.1} parent=1 // pred_check_branch
      %75 = sbr.rel (0) target = $region53
    $region52: #{mlp_forward.1} parent=1 // pred_region
      %76 = dma.done [#allocation6], 2048
    $region53: #{mlp_forward.1} parent=1 // pred_fallthru
      _
    // Predicated region
    $region54: #{mlp_forward.1} parent=1 // pred_check
      _
    $region55: #{mlp_forward.1} parent=1 // pred_check_branch
      %78 = sbr.rel (0) target = $region57
    $region56: #{mlp_forward.1} parent=1 // pred_region
      %79 = dma.done [#allocation6], 2048
    $region57: #{mlp_forward.1} parent=1 // pred_fallthru
      _
    %v80 = vld [vmem:[%s0] sm:$0xff]
    %v81 = vld [vmem:[#allocation2] sm:$0xff]
    %v82 = vld [vmem:[#allocation2 + $0x8] sm:$0xff]
    %v83 = vld [vmem:[#allocation2 + $0x10] sm:$0xff]
    %v84 = vld [vmem:[#allocation2 + $0x18] sm:$0xff]
    %v85 = vld [vmem:[#allocation2 + $0x20] sm:$0xff]
    %v86 = vld [vmem:[#allocation2 + $0x28] sm:$0xff]
    %v87 = vld [vmem:[#allocation2 + $0x30] sm:$0xff]
    %v88 = vld [vmem:[#allocation2 + $0x38] sm:$0xff]
    %v89 = vld [vmem:[#allocation2 + $0x40] sm:$0xff]
    %v90 = vld [vmem:[#allocation2 + $0x48] sm:$0xff]
    %v91 = vld [vmem:[#allocation2 + $0x50] sm:$0xff]
    %v92 = vld [vmem:[#allocation2 + $0x58] sm:$0xff]
    %v93 = vld [vmem:[#allocation2 + $0x60] sm:$0xff]
    %v94 = vld [vmem:[#allocation2 + $0x68] sm:$0xff]
    %v95 = vld [vmem:[#allocation2 + $0x70] sm:$0xff]
    %v96 = vld [vmem:[#allocation2 + $0x78] sm:$0xff]
    %v97 = vld [vmem:[%s2] sm:$0x1]
    %v99 = vlaneseq
    %v100 = vshrl.u32 %v99, 7
    %v101 = vsub.s32 0, %v100
    %v102 = vrot.slane %v97, %v101
    %104 = vmatprep.subr.mxu0 0.0
    %105 = vmatpush1.msra.mxu0 %v96
    %106 = vmatprep.subr.mxu0 0.0
    %107 = vmatpush1.msra.mxu0 %v95
    %108 = vmatprep.subr.mxu0 0.0
    %109 = vmatpush1.msra.mxu0 %v94
    %110 = vmatprep.subr.mxu0 0.0
    %111 = vmatpush1.msra.mxu0 %v93
    %112 = vmatprep.subr.mxu0 0.0
    %113 = vmatpush1.msra.mxu0 %v92
    %114 = vmatprep.subr.mxu0 0.0
    %115 = vmatpush1.msra.mxu0 %v91
    %116 = vmatprep.subr.mxu0 0.0
    %117 = vmatpush1.msra.mxu0 %v90
    %118 = vmatprep.subr.mxu0 0.0
    %119 = vmatpush1.msra.mxu0 %v89
    %120 = vmatprep.subr.mxu0 0.0
    %121 = vmatpush1.msra.mxu0 %v88
    %122 = vmatprep.subr.mxu0 0.0
    %123 = vmatpush1.msra.mxu0 %v87
    %124 = vmatprep.subr.mxu0 0.0
    %125 = vmatpush1.msra.mxu0 %v86
    %126 = vmatprep.subr.mxu0 0.0
    %127 = vmatpush1.msra.mxu0 %v85
    %128 = vmatprep.subr.mxu0 0.0
    %129 = vmatpush1.msra.mxu0 %v84
    %130 = vmatprep.subr.mxu0 0.0
    %131 = vmatpush1.msra.mxu0 %v83
    %132 = vmatprep.subr.mxu0 0.0
    %133 = vmatpush1.msra.mxu0 %v82
    %134 = vmatprep.subr.mxu0 0.0
    %135 = vmatpush1.msra.mxu0 %v81
    %136 = vmatprep.subr.mxu0 0.0
    %137 = vmatpush2.msra.mxu0 0.0
    %138 = vmatprep.subr.mxu0 0.0
    %139 = vmatpush2.msra.mxu0 0.0
    %140 = vmatprep.subr.mxu0 0.0
    %141 = vmatpush2.msra.mxu0 0.0
    %142 = vmatprep.subr.mxu0 0.0
    %143 = vmatpush2.msra.mxu0 0.0
    %144 = vmatprep.subr.mxu0 0.0
    %145 = vmatpush2.msra.mxu0 0.0
    %146 = vmatprep.subr.mxu0 0.0
    %147 = vmatpush2.msra.mxu0 0.0
    %148 = vmatprep.subr.mxu0 0.0
    %149 = vmatpush2.msra.mxu0 0.0
    %150 = vmatprep.subr.mxu0 0.0
    %151 = vmatpush2.msra.mxu0 0.0
    %152 = vmatprep.subr.mxu0 0.0
    %153 = vmatpush2.msra.mxu0 0.0
    %154 = vmatprep.subr.mxu0 0.0
    %155 = vmatpush2.msra.mxu0 0.0
    %156 = vmatprep.subr.mxu0 0.0
    %157 = vmatpush2.msra.mxu0 0.0
    %158 = vmatprep.subr.mxu0 0.0
    %159 = vmatpush2.msra.mxu0 0.0
    %160 = vmatprep.subr.mxu0 0.0
    %161 = vmatpush2.msra.mxu0 0.0
    %162 = vmatprep.subr.mxu0 0.0
    %163 = vmatpush2.msra.mxu0 0.0
    %164 = vmatprep.subr.mxu0 0.0
    %165 = vmatpush2.msra.mxu0 0.0
    %166 = vmatprep.subr.mxu0 0.0
    %167 = vmatpush2.msra.mxu0 0.0
    %168 = vmatprep.mubr.f32.mxu0 0.0
    %169 = vmatmul.mubr.f32.gmra.mxu0 %v80
    %v170 = vpop.f32.mrf.mxu0
    %v171 = vadd.f32 %v102, %v170
    %v172 = vpop.f32.mrf.mxu0
    %173 = vdwg.mxu0
    %v174 = vld [vmem:[%s3] sm:$0x1]
    %v175 = vld [vmem:[%s4] sm:$0x1]
    %v176 = vld [vmem:[#allocation5] sm:$0xff]
    %v177 = vld [vmem:[#allocation5 + $0x8] sm:$0xff]
    %v178 = vld [vmem:[#allocation5 + $0x10] sm:$0xff]
    %v179 = vld [vmem:[#allocation5 + $0x18] sm:$0xff]
    %v180 = vld [vmem:[#allocation5 + $0x20] sm:$0xff]
    %v181 = vld [vmem:[#allocation5 + $0x28] sm:$0xff]
    %v182 = vld [vmem:[#allocation5 + $0x30] sm:$0xff]
    %v183 = vld [vmem:[#allocation5 + $0x38] sm:$0xff]
    %v184 = vld [vmem:[#allocation5 + $0x40] sm:$0xff]
    %v185 = vld [vmem:[#allocation5 + $0x48] sm:$0xff]
    %v186 = vld [vmem:[#allocation5 + $0x50] sm:$0xff]
    %v187 = vld [vmem:[#allocation5 + $0x58] sm:$0xff]
    %v188 = vld [vmem:[#allocation5 + $0x60] sm:$0xff]
    %v189 = vld [vmem:[#allocation5 + $0x68] sm:$0xff]
    %v190 = vld [vmem:[#allocation5 + $0x70] sm:$0xff]
    %v191 = vld [vmem:[#allocation5 + $0x78] sm:$0xff]
    %v192 = vld [vmem:[%s6] sm:$0x1]
    %v193 = vrot.slane %v171, 4
    %v194 = vadd.f32 %v171, %v193
    %v195 = vrot.slane %v194, 2
    %v196 = vadd.f32 %v194, %v195
    %v197 = vrot.slane %v196, 1
    %v198 = vadd.f32 %v196, %v197
    %v199 = vmul.f32 %v198, 0.125
    %v200 = vsub.f32 %v171, %v199
    %v201 = vmul.f32 %v200, %v200
    %v202 = vrot.slane %v201, 4
    %v203 = vadd.f32 %v201, %v202
    %v204 = vrot.slane %v203, 2
    %v205 = vadd.f32 %v203, %v204
    %v206 = vrot.slane %v205, 1
    %v207 = vadd.f32 %v205, %v206
    %v208 = vmul.f32 %v207, 0.125
    %v209 = vadd.f32 %v208, 1e-05
    %v210 = vrsqrt.pop %v209
    %v211 = vmul.f32 %v200, %v210
    %v213 = vlaneseq
    %v214 = vshrl.u32 %v213, 7
    %v215 = vsub.s32 0, %v214
    %v216 = vrot.slane %v174, %v215
    %v218 = vmul.f32 %v211, %v216
    %v220 = vlaneseq
    %v221 = vshrl.u32 %v220, 7
    %v222 = vsub.s32 0, %v221
    %v223 = vrot.slane %v175, %v222
    %v225 = vadd.f32 %v218, %v223
    %v226 = vmax.f32 %v225, 0.0
    %v228 = vlaneseq
    %v229 = vshrl.u32 %v228, 7
    %v230 = vsub.s32 0, %v229
    %v231 = vrot.slane %v192, %v230
    %233 = vmatprep.subr.mxu0 0.0
    %234 = vmatpush1.msra.mxu0 %v191
    %235 = vmatprep.subr.mxu0 0.0
    %236 = vmatpush1.msra.mxu0 %v190
    %237 = vmatprep.subr.mxu0 0.0
    %238 = vmatpush1.msra.mxu0 %v189
    %239 = vmatprep.subr.mxu0 0.0
    %240 = vmatpush1.msra.mxu0 %v188
    %241 = vmatprep.subr.mxu0 0.0
    %242 = vmatpush1.msra.mxu0 %v187
    %243 = vmatprep.subr.mxu0 0.0
    %244 = vmatpush1.msra.mxu0 %v186
    %245 = vmatprep.subr.mxu0 0.0
    %246 = vmatpush1.msra.mxu0 %v185
    %247 = vmatprep.subr.mxu0 0.0
    %248 = vmatpush1.msra.mxu0 %v184
    %249 = vmatprep.subr.mxu0 0.0
    %250 = vmatpush1.msra.mxu0 %v183
    %251 = vmatprep.subr.mxu0 0.0
    %252 = vmatpush1.msra.mxu0 %v182
    %253 = vmatprep.subr.mxu0 0.0
    %254 = vmatpush1.msra.mxu0 %v181
    %255 = vmatprep.subr.mxu0 0.0
    %256 = vmatpush1.msra.mxu0 %v180
    %257 = vmatprep.subr.mxu0 0.0
    %258 = vmatpush1.msra.mxu0 %v179
    %259 = vmatprep.subr.mxu0 0.0
    %260 = vmatpush1.msra.mxu0 %v178
    %261 = vmatprep.subr.mxu0 0.0
    %262 = vmatpush1.msra.mxu0 %v177
    %263 = vmatprep.subr.mxu0 0.0
    %264 = vmatpush1.msra.mxu0 %v176
    %265 = vmatprep.subr.mxu0 0.0
    %266 = vmatpush2.msra.mxu0 0.0
    %267 = vmatprep.subr.mxu0 0.0
    %268 = vmatpush2.msra.mxu0 0.0
    %269 = vmatprep.subr.mxu0 0.0
    %270 = vmatpush2.msra.mxu0 0.0
    %271 = vmatprep.subr.mxu0 0.0
    %272 = vmatpush2.msra.mxu0 0.0
    %273 = vmatprep.subr.mxu0 0.0
    %274 = vmatpush2.msra.mxu0 0.0
    %275 = vmatprep.subr.mxu0 0.0
    %276 = vmatpush2.msra.mxu0 0.0
    %277 = vmatprep.subr.mxu0 0.0
    %278 = vmatpush2.msra.mxu0 0.0
    %279 = vmatprep.subr.mxu0 0.0
    %280 = vmatpush2.msra.mxu0 0.0
    %281 = vmatprep.subr.mxu0 0.0
    %282 = vmatpush2.msra.mxu0 0.0
    %283 = vmatprep.subr.mxu0 0.0
    %284 = vmatpush2.msra.mxu0 0.0
    %285 = vmatprep.subr.mxu0 0.0
    %286 = vmatpush2.msra.mxu0 0.0
    %287 = vmatprep.subr.mxu0 0.0
    %288 = vmatpush2.msra.mxu0 0.0
    %289 = vmatprep.subr.mxu0 0.0
    %290 = vmatpush2.msra.mxu0 0.0
    %291 = vmatprep.subr.mxu0 0.0
    %292 = vmatpush2.msra.mxu0 0.0
    %293 = vmatprep.subr.mxu0 0.0
    %294 = vmatpush2.msra.mxu0 0.0
    %295 = vmatprep.subr.mxu0 0.0
    %296 = vmatpush2.msra.mxu0 0.0
    %297 = vmatprep.mubr.f32.mxu0 0.0
    %298 = vmatmul.mubr.f32.gmra.mxu0 %v226
    %v299 = vpop.f32.mrf.mxu0
    %v300 = vadd.f32 %v231, %v299
    %v301 = vpop.f32.mrf.mxu0
    %302 = vdwg.mxu0
    %v303 = vld [vmem:[%s7] sm:$0x1]
    %v304 = vld [vmem:[%s8] sm:$0x1]
    %v305 = vld [vmem:[#allocation7] sm:$0xff]
    %v306 = vld [vmem:[#allocation7 + $0x8] sm:$0xff]
    %v307 = vld [vmem:[#allocation7 + $0x10] sm:$0xff]
    %v308 = vld [vmem:[#allocation7 + $0x18] sm:$0xff]
    %v309 = vld [vmem:[#allocation7 + $0x20] sm:$0xff]
    %v310 = vld [vmem:[#allocation7 + $0x28] sm:$0xff]
    %v311 = vld [vmem:[#allocation7 + $0x30] sm:$0xff]
    %v312 = vld [vmem:[#allocation7 + $0x38] sm:$0xff]
    %v313 = vld [vmem:[#allocation7 + $0x40] sm:$0xff]
    %v314 = vld [vmem:[#allocation7 + $0x48] sm:$0xff]
    %v315 = vld [vmem:[#allocation7 + $0x50] sm:$0xff]
    %v316 = vld [vmem:[#allocation7 + $0x58] sm:$0xff]
    %v317 = vld [vmem:[#allocation7 + $0x60] sm:$0xff]
    %v318 = vld [vmem:[#allocation7 + $0x68] sm:$0xff]
    %v319 = vld [vmem:[#allocation7 + $0x70] sm:$0xff]
    %v320 = vld [vmem:[#allocation7 + $0x78] sm:$0xff]
    %v321 = vld [vmem:[%s10] sm:$0x1]
    %v322 = vrot.slane %v300, 4
    %v323 = vadd.f32 %v300, %v322
    %v324 = vrot.slane %v323, 2
    %v325 = vadd.f32 %v323, %v324
    %v326 = vrot.slane %v325, 1
    %v327 = vadd.f32 %v325, %v326
    %v328 = vmul.f32 %v327, 0.125
    %v329 = vsub.f32 %v300, %v328
    %v330 = vmul.f32 %v329, %v329
    %v331 = vrot.slane %v330, 4
    %v332 = vadd.f32 %v330, %v331
    %v333 = vrot.slane %v332, 2
    %v334 = vadd.f32 %v332, %v333
    %v335 = vrot.slane %v334, 1
    %v336 = vadd.f32 %v334, %v335
    %v337 = vmul.f32 %v336, 0.125
    %v338 = vadd.f32 %v337, 1e-05
    %v339 = vrsqrt.pop %v338
    %v340 = vmul.f32 %v329, %v339
    %v342 = vlaneseq
    %v343 = vshrl.u32 %v342, 7
    %v344 = vsub.s32 0, %v343
    %v345 = vrot.slane %v303, %v344
    %v347 = vmul.f32 %v340, %v345
    %v349 = vlaneseq
    %v350 = vshrl.u32 %v349, 7
    %v351 = vsub.s32 0, %v350
    %v352 = vrot.slane %v304, %v351
    %v354 = vadd.f32 %v347, %v352
    %v355 = vmax.f32 %v354, 0.0
    %v357 = vlaneseq
    %v358 = vshrl.u32 %v357, 7
    %v359 = vsub.s32 0, %v358
    %v360 = vrot.slane %v321, %v359
    %362 = vmatprep.subr.mxu0 0.0
    %363 = vmatpush1.msra.mxu0 %v320
    %364 = vmatprep.subr.mxu0 0.0
    %365 = vmatpush1.msra.mxu0 %v319
    %366 = vmatprep.subr.mxu0 0.0
    %367 = vmatpush1.msra.mxu0 %v318
    %368 = vmatprep.subr.mxu0 0.0
    %369 = vmatpush1.msra.mxu0 %v317
    %370 = vmatprep.subr.mxu0 0.0
    %371 = vmatpush1.msra.mxu0 %v316
    %372 = vmatprep.subr.mxu0 0.0
    %373 = vmatpush1.msra.mxu0 %v315
    %374 = vmatprep.subr.mxu0 0.0
    %375 = vmatpush1.msra.mxu0 %v314
    %376 = vmatprep.subr.mxu0 0.0
    %377 = vmatpush1.msra.mxu0 %v313
    %378 = vmatprep.subr.mxu0 0.0
    %379 = vmatpush1.msra.mxu0 %v312
    %380 = vmatprep.subr.mxu0 0.0
    %381 = vmatpush1.msra.mxu0 %v311
    %382 = vmatprep.subr.mxu0 0.0
    %383 = vmatpush1.msra.mxu0 %v310
    %384 = vmatprep.subr.mxu0 0.0
    %385 = vmatpush1.msra.mxu0 %v309
    %386 = vmatprep.subr.mxu0 0.0
    %387 = vmatpush1.msra.mxu0 %v308
    %388 = vmatprep.subr.mxu0 0.0
    %389 = vmatpush1.msra.mxu0 %v307
    %390 = vmatprep.subr.mxu0 0.0
    %391 = vmatpush1.msra.mxu0 %v306
    %392 = vmatprep.subr.mxu0 0.0
    %393 = vmatpush1.msra.mxu0 %v305
    %394 = vmatprep.subr.mxu0 0.0
    %395 = vmatpush2.msra.mxu0 0.0
    %396 = vmatprep.subr.mxu0 0.0
    %397 = vmatpush2.msra.mxu0 0.0
    %398 = vmatprep.subr.mxu0 0.0
    %399 = vmatpush2.msra.mxu0 0.0
    %400 = vmatprep.subr.mxu0 0.0
    %401 = vmatpush2.msra.mxu0 0.0
    %402 = vmatprep.subr.mxu0 0.0
    %403 = vmatpush2.msra.mxu0 0.0
    %404 = vmatprep.subr.mxu0 0.0
    %405 = vmatpush2.msra.mxu0 0.0
    %406 = vmatprep.subr.mxu0 0.0
    %407 = vmatpush2.msra.mxu0 0.0
    %408 = vmatprep.subr.mxu0 0.0
    %409 = vmatpush2.msra.mxu0 0.0
    %410 = vmatprep.subr.mxu0 0.0
    %411 = vmatpush2.msra.mxu0 0.0
    %412 = vmatprep.subr.mxu0 0.0
    %413 = vmatpush2.msra.mxu0 0.0
    %414 = vmatprep.subr.mxu0 0.0
    %415 = vmatpush2.msra.mxu0 0.0
    %416 = vmatprep.subr.mxu0 0.0
    %417 = vmatpush2.msra.mxu0 0.0
    %418 = vmatprep.subr.mxu0 0.0
    %419 = vmatpush2.msra.mxu0 0.0
    %420 = vmatprep.subr.mxu0 0.0
    %421 = vmatpush2.msra.mxu0 0.0
    %422 = vmatprep.subr.mxu0 0.0
    %423 = vmatpush2.msra.mxu0 0.0
    %424 = vmatprep.subr.mxu0 0.0
    %425 = vmatpush2.msra.mxu0 0.0
    %426 = vmatprep.mubr.f32.mxu0 0.0
    %427 = vmatmul.mubr.f32.gmra.mxu0 %v355
    %v428 = vpop.f32.mrf.mxu0
    %v429 = vadd.f32 %v360, %v428
    %v430 = vpop.f32.mrf.mxu0
    %431 = vdwg.mxu0
    %432 = vst [vmem:[#allocation8] sm:$0xff] %v429
    // Predicated region
    $region58: #{mlp_forward.1} parent=1 // pred_check
      _
    $region59: #{mlp_forward.1} parent=1 // pred_check_branch
      %434 = sbr.rel (0) target = $region61
    $region60: #{mlp_forward.1} parent=1 // pred_region
      %s436 = ssub.s32 128, 128
      %437 = vsyncadd [#allocation4], %s436
      %s439 = sshll.u32 [#allocation8], 4
      %s440 = int_to_ptr.vmem [resolvable:$true] %s439
      %442 = dma.vmem_to_hbm [thread:$0]  %s440, 128, %s11, [#allocation4]
    $region61: #{mlp_forward.1} parent=1 // pred_fallthru
      _
    // Predicated region
    $region62: #{mlp_forward.1} parent=1 // pred_check
      _
    $region63: #{mlp_forward.1} parent=1 // pred_check_branch
      %444 = sbr.rel (0) target = $region65
    $region64: #{mlp_forward.1} parent=1 // pred_region
      %445 = dma.done [#allocation4], 128
    $region65: #{mlp_forward.1} parent=1 // pred_fallthru
      _
    %446 = vsyncpa [#allocation3], 1
    %447 = vsyncpa [#allocation6], 1
    %448 = vsyncpa [#allocation4], 1

</llo_original>
